<compile_context>
chip_gen: v5e
topology: v5e:2x2
jax: 0.10.0
libtpu: 0.0.40
codegen_flags: <defaults>
</compile_context>

<pallas_src>
import functools
import math

import jax
import jax.numpy as jnp
from jax.experimental import pallas as pl
from jax.experimental.pallas import tpu as pltpu

BN_EPS = 1e-5


def _round_up(v, m):
    return (v + m - 1) // m * m


def _pad2(a, rows, cols, dtype):
    a = a.astype(dtype)
    pr, pc = rows - a.shape[0], cols - a.shape[1]
    if pr or pc:
        a = jnp.pad(a, ((0, pr), (0, pc)))
    return a


def _vmem_capacity_bytes():
    try:
        info = pltpu.get_tpu_info()
        for name in ("vmem_capacity_bytes", "vmem_bytes"):
            cap = getattr(info, name, None)
            if cap:
                return int(cap)
    except Exception:
        pass
    return 64 * 1024 * 1024  # conservative: v7x per-TensorCore VMEM


def _vmem_need(tb, inp, hidp, outp):
    # Double-buffered block bytes per pass (Pallas double-buffers resident
    # constant-index inputs too), plus a small slack for compiler scratch.
    p1 = (tb * inp * 2          # x tile (bf16)
          + inp * hidp * 2      # w1 (bf16, resident)
          + tb * hidp * 2       # h tile out (bf16)
          + 2 * hidp * 4)       # partial stats out (f32)
    p2 = (2 * hidp * 4          # scale + shift (f32, resident)
          + tb * hidp * 2       # h tile (bf16)
          + hidp * outp * 2     # w2 (bf16, resident)
          + outp * 4            # b2 (f32, resident)
          + tb * outp * 4)      # y tile out (f32)
    return 2 * max(p1, p2) + (2 << 20)


# ---------------------------------------------------------------------------
# Pass 1: h = x @ w1  (+ per-tile partial sums for the BN statistics)
# ---------------------------------------------------------------------------
def _fc1_stats_kernel(x_ref, w1_ref, h_ref, stats_ref):
    h = jnp.dot(x_ref[...], w1_ref[...], preferred_element_type=jnp.float32)
    h_ref[...] = h.astype(h_ref.dtype)
    # Padded batch rows are exactly zero (no FC1 bias), so no masking needed.
    stats_ref[0, 0:1, :] = jnp.sum(h, axis=0, keepdims=True)
    stats_ref[0, 1:2, :] = jnp.sum(h * h, axis=0, keepdims=True)


# ---------------------------------------------------------------------------
# Pass 2: y = relu(h * scale + shift) @ w2 + b2
# ---------------------------------------------------------------------------
def _bn_relu_fc2_kernel(scale_ref, shift_ref, h_ref, w2_ref, b2_ref, o_ref):
    hn = jnp.maximum(
        h_ref[...].astype(jnp.float32) * scale_ref[...] + shift_ref[...], 0.0)
    y = jnp.dot(hn.astype(jnp.bfloat16), w2_ref[...],
                preferred_element_type=jnp.float32) + b2_ref[...]
    o_ref[...] = y.astype(o_ref.dtype)


def prediction_mlp(x, params, *, batch_tile=1024):
    """x: [B, in_features] float32. params: dict of weights (pre-transposed)."""
    B, in_f = x.shape
    w1, gamma, beta, w2, b2 = (params["w1"], params["gamma"], params["beta"],
                               params["w2"], params["b2"])
    # NOTE: params["b1"] is intentionally unused: training-mode BatchNorm
    # cancels the FC1 bias exactly, so dropping it is mathematically exact.
    hid = w1.shape[1]
    out_f = w2.shape[1]

    inp = _round_up(in_f, 128)
    hidp = _round_up(hid, 128)
    outp = _round_up(out_f, 128)

    # ---- batch tiling: >=4 grid steps when the batch allows, 8-row aligned,
    # ---- minimal padding waste, and a VMEM footprint under budget. ---------
    cap = _vmem_capacity_bytes()
    budget = int(0.8 * cap)
    nb_max = max(pl.cdiv(B, 8), 1)
    nb = max(pl.cdiv(B, batch_tile), min(4, nb_max))
    while True:
        tb = _round_up(pl.cdiv(B, nb), 8)
        need = _vmem_need(tb, inp, hidp, outp)
        if need <= budget or nb >= nb_max:
            break
        nb = min(nb * 2, nb_max)
    bp = _round_up(B, tb)
    nb = bp // tb
    vmem_limit = int(max(min(max(need, 32 << 20), budget), need))

    f32 = jnp.float32
    bf16 = jnp.bfloat16
    xp = _pad2(x, bp, inp, bf16)                 # bf16 fold into the pad
    w1p = _pad2(w1, inp, hidp, bf16)
    gp = _pad2(gamma, 1, hidp, f32)
    bep = _pad2(beta, 1, hidp, f32)
    w2p = _pad2(w2, hidp, outp, bf16)
    b2p = _pad2(b2, 1, outp, f32)

    cparams = pltpu.CompilerParams(
        dimension_semantics=("parallel",),
        vmem_limit_bytes=vmem_limit,
    )

    # ---- pass 1: linear 1 + partial BN stats ------------------------------
    h, stats = pl.pallas_call(
        _fc1_stats_kernel,
        out_shape=(
            jax.ShapeDtypeStruct((bp, hidp), bf16),           # h (bf16 round-trip)
            jax.ShapeDtypeStruct((nb, 2, hidp), f32),         # per-tile sum / sumsq
        ),
        grid=(nb,),
        in_specs=[
            pl.BlockSpec((tb, inp), lambda i: (i, 0)),        # x tile (pipelined)
            pl.BlockSpec((inp, hidp), lambda i: (0, 0)),      # w1 resident
        ],
        out_specs=(
            pl.BlockSpec((tb, hidp), lambda i: (i, 0)),
            pl.BlockSpec((1, 2, hidp), lambda i: (i, 0, 0)),
        ),
        compiler_params=cparams,
    )(xp, w1p)

    # ---- BN fold (tiny O(hidp) JAX work, done once, not per grid step) ----
    tot = jnp.sum(stats, axis=0)                              # [2, hidp]
    mean = tot[0:1, :] / B
    var = jnp.maximum(tot[1:2, :] / B - mean * mean, 0.0)     # biased (training)
    scale = gp * jax.lax.rsqrt(var + BN_EPS)                  # [1, hidp]
    shift = bep - mean * scale                                # [1, hidp]

    # ---- pass 2: BN + ReLU + linear 2 -------------------------------------
    yp = pl.pallas_call(
        _bn_relu_fc2_kernel,
        out_shape=jax.ShapeDtypeStruct((bp, outp), x.dtype),
        grid=(nb,),
        in_specs=[
            pl.BlockSpec((1, hidp), lambda i: (0, 0)),        # scale resident
            pl.BlockSpec((1, hidp), lambda i: (0, 0)),        # shift resident
            pl.BlockSpec((tb, hidp), lambda i: (i, 0)),       # h tile (pipelined)
            pl.BlockSpec((hidp, outp), lambda i: (0, 0)),     # w2 resident
            pl.BlockSpec((1, outp), lambda i: (0, 0)),        # b2 resident
        ],
        out_specs=pl.BlockSpec((tb, outp), lambda i: (i, 0)),
        compiler_params=cparams,
    )(scale, shift, h, w2p, b2p)

    return yp[:B, :out_f]


def init_params(key, in_features, hidden_features, out_features):
    """Deterministic init mimicking PyTorch defaults (uniform +-1/sqrt(fan_in))."""
    k1, k2, k3, k4 = jax.random.split(key, 4)
    bound1 = 1.0 / math.sqrt(in_features)
    bound2 = 1.0 / math.sqrt(hidden_features)
    # Stored pre-transposed: [in, hidden] and [hidden, out].
    w1 = jax.random.uniform(k1, (in_features, hidden_features), jnp.float32,
                            -bound1, bound1)
    b1 = jax.random.uniform(k2, (1, hidden_features), jnp.float32, -bound1, bound1)
    w2 = jax.random.uniform(k3, (hidden_features, out_features), jnp.float32,
                            -bound2, bound2)
    b2 = jax.random.uniform(k4, (1, out_features), jnp.float32, -bound2, bound2)
    gamma = jnp.ones((1, hidden_features), jnp.float32)
    beta = jnp.zeros((1, hidden_features), jnp.float32)
    return {"w1": w1, "b1": b1, "gamma": gamma, "beta": beta, "w2": w2, "b2": b2}


def reference(x, p):
    h = x @ p["w1"] + p["b1"]
    mean = h.mean(axis=0, keepdims=True)
    var = ((h - mean) ** 2).mean(axis=0, keepdims=True)   # biased, training mode
    h = (h - mean) / jnp.sqrt(var + BN_EPS) * p["gamma"] + p["beta"]
    h = jnp.maximum(h, 0.0)
    return h @ p["w2"] + p["b2"]


if __name__ == "__main__":
    B, IN, HID, OUT = 8, 32, 64, 16
    key = jax.random.PRNGKey(0)
    kx, kp = jax.random.split(key)
    x = jax.random.normal(kx, (B, IN), jnp.float32)
    params = init_params(kp, IN, HID, OUT)

    out = prediction_mlp(x, params)
    out = jax.block_until_ready(out)

    ref = reference(x, params)
    assert out.shape == (B, OUT)
    # bf16 MXU inputs (f32 accumulation, f32 BN math): loosened vs f32 reference.
    assert jnp.allclose(out, ref, atol=3e-2, rtol=3e-2), "mismatch vs reference"
    # TODO(synk): BatchNorm1d running_mean/var tracking (unbiased var, momentum)
    # is a training-time buffer update, not part of the forward output.
    print("KERNEL_OK")
</pallas_src>

<mosaic_0001>
module attributes {stable_mosaic.version = 11 : i64} {
  func.func @_fc1_stats_kernel(%arg0: i32, %arg1: memref<8x128xbf16, #tpu.memory_space<vmem>>, %arg2: memref<128x128xbf16, #tpu.memory_space<vmem>>, %arg3: memref<8x128xbf16, #tpu.memory_space<vmem>>, %arg4: memref<1x2x128xf32, #tpu.memory_space<vmem>>) attributes {dimension_semantics = [#tpu.dimension_semantics<parallel>], iteration_bounds = array<i64: 1>, scalar_prefetch = 0 : i64, scratch_operands = 0 : i64, tpu.core_type = #tpu.core_type<tc>, window_params = [{transform_indices = @transform_0, window_bounds = array<i64: 8, 128>}, {pipeline_mode = #tpu.pipeline_mode<synchronous>, transform_indices = @transform_1, window_bounds = array<i64: 128, 128>}, {transform_indices = @transform_2, window_bounds = array<i64: 8, 128>}, {transform_indices = @transform_3, window_bounds = array<i64: 1, 2, 128>}]} {
    %c0 = arith.constant 0 : index
    %c0_0 = arith.constant 0 : index
    %0 = vector.load %arg1[%c0, %c0_0] : memref<8x128xbf16, #tpu.memory_space<vmem>>, vector<8x128xbf16>
    %c0_1 = arith.constant 0 : index
    %c0_2 = arith.constant 0 : index
    %1 = vector.load %arg2[%c0_1, %c0_2] : memref<128x128xbf16, #tpu.memory_space<vmem>>, vector<128x128xbf16>
    %cst = arith.constant dense<0.000000e+00> : vector<8x128xf32>
    %2 = tpu.matmul %0, %1, %cst {dimension_numbers = #tpu.dot_dimension_numbers<[1], [0], [0], [1], [0, 0, 1, 1], [], []>} : vector<8x128xbf16>, vector<128x128xbf16>, vector<8x128xf32> -> vector<8x128xf32>
    %3 = arith.truncf %2 : vector<8x128xf32> to vector<8x128xbf16>
    %c0_3 = arith.constant 0 : index
    %c0_4 = arith.constant 0 : index
    %4 = vector.load %arg3[%c0_3, %c0_4] : memref<8x128xbf16, #tpu.memory_space<vmem>>, vector<8x128xbf16>
    tpu.vector_store %arg3[%c0_3, %c0_4], %3 {strides = array<i32>} : memref<8x128xbf16, #tpu.memory_space<vmem>>, vector<8x128xbf16>,
    %cst_5 = arith.constant dense<0.000000e+00> : vector<128xf32>
    %5 = vector.multi_reduction <add>, %2, %cst_5 [0] : vector<8x128xf32> to vector<128xf32>
    %6 = vector.shape_cast %5 : vector<128xf32> to vector<1x128xf32>
    %c0_6 = arith.constant 0 : index
    %c0_7 = arith.constant 0 : index
    %c0_8 = arith.constant 0 : index
    %7 = vector.load %arg4[%c0_6, %c0_7, %c0_8] : memref<1x2x128xf32, #tpu.memory_space<vmem>>, vector<1x1x128xf32>
    %8 = vector.shape_cast %7 : vector<1x1x128xf32> to vector<1x128xf32>
    %9 = vector.shape_cast %6 : vector<1x128xf32> to vector<1x1x128xf32>
    tpu.vector_store %arg4[%c0_6, %c0_7, %c0_8], %9 {strides = array<i32>} : memref<1x2x128xf32, #tpu.memory_space<vmem>>, vector<1x1x128xf32>,
    %10 = arith.mulf %2, %2 : vector<8x128xf32>
    %cst_9 = arith.constant dense<0.000000e+00> : vector<128xf32>
    %11 = vector.multi_reduction <add>, %10, %cst_9 [0] : vector<8x128xf32> to vector<128xf32>
    %12 = vector.shape_cast %11 : vector<128xf32> to vector<1x128xf32>
    %c0_10 = arith.constant 0 : index
    %c1 = arith.constant 1 : index
    %c0_11 = arith.constant 0 : index
    %13 = vector.load %arg4[%c0_10, %c1, %c0_11] : memref<1x2x128xf32, #tpu.memory_space<vmem>>, vector<1x1x128xf32>
    %14 = vector.shape_cast %13 : vector<1x1x128xf32> to vector<1x128xf32>
    %15 = vector.shape_cast %12 : vector<1x128xf32> to vector<1x1x128xf32>
    tpu.vector_store %arg4[%c0_10, %c1, %c0_11], %15 {strides = array<i32>} : memref<1x2x128xf32, #tpu.memory_space<vmem>>, vector<1x1x128xf32>,
    return
  }
  func.func @transform_0(%arg0: i32) -> (i32, i32) {
    %c0_i32 = arith.constant 0 : i32
    %c0_i32_0 = arith.constant 0 : i32
    return %arg0, %c0_i32 : i32, i32
  }
  func.func @transform_1(%arg0: i32) -> (i32, i32) {
    %c0_i32 = arith.constant 0 : i32
    %c0_i32_0 = arith.constant 0 : i32
    %c0_i32_1 = arith.constant 0 : i32
    return %c0_i32, %c0_i32_0 : i32, i32
  }
  func.func @transform_2(%arg0: i32) -> (i32, i32) {
    %c0_i32 = arith.constant 0 : i32
    %c0_i32_0 = arith.constant 0 : i32
    return %arg0, %c0_i32 : i32, i32
  }
  func.func @transform_3(%arg0: i32) -> (i32, i32, i32) {
    %c0_i32 = arith.constant 0 : i32
    %c0_i32_0 = arith.constant 0 : i32
    %c0_i32_1 = arith.constant 0 : i32
    return %arg0, %c0_i32, %c0_i32_0 : i32, i32, i32
  }
}

</mosaic_0001>

<llo_original>
// kernel: tpu_custom_call.1
$region0: #{tpu_custom_call.1}
  #allocation0 [shape = 'u32[]', space=smem, size = 0x4, offset = 0x4, fixed_abs, tag = 'smem constant byte address 0x4 - core index']
  #allocation1 [shape = 'u32[72,128]{1,0:T(1,128)}', space=vmem, size = 0x9000, scoped, tag = 'internal scratch']
  %s0 = inlined_call_operand.hbm [shape: bf16[8,128], index: 0, kind: input, shape index: {}]
  %s1 = inlined_call_operand.hbm [shape: bf16[128,128], index: 1, kind: input, shape index: {}]
  %s2 = inlined_call_operand.hbm [shape: bf16[8,128], index: 2, kind: output, shape index: {0}]
  %s3 = inlined_call_operand.hbm [shape: f32[1,2,128], index: 3, kind: output, shape index: {1}]
  %4 = xla_tuple %s2, %s3
  %s5 = sld [smem:[#allocation0]]
  $region34: #{tpu_custom_call.1} parent=0
    _
  %s7 = ssub.s32 1, %s5
  %s8 = scalar_select 0, %s7, %s5
  $region1: #{tpu_custom_call.1} parent=0
    #allocation2 [shape = 'u8[2048]{0}', space=vmem, size = 0x800, scoped, tag = 'input window, operand 0, single buffered']
    #allocation3 [shape = 's32[1]{0}', space=sflag, size = 0x4, scoped, tag = 'scoped memory for tpu_custom_call.1']
    #allocation4 [shape = 's32[1]{0}', space=sflag, size = 0x4, scoped, tag = 'scoped memory for tpu_custom_call.1']
    #allocation5 [shape = 'u8[32768]{0}', space=vmem, size = 0x8000, scoped, tag = 'input window, operand 1, single buffered']
    #allocation6 [shape = 's32[1]{0}', space=sflag, size = 0x4, scoped, tag = 'scoped memory for tpu_custom_call.1']
    #allocation7 [shape = 'u8[2048]{0}', space=vmem, size = 0x800, scoped, tag = 'output window, operand 0, single buffered']
    #allocation8 [shape = 'u8[1024]{0}', space=vmem, size = 0x400, scoped, tag = 'output window, operand 1, single buffered']
    #allocation9 [shape = 's32[1]{0}', space=sflag, size = 0x4, scoped, tag = 'scoped memory for tpu_custom_call.1']
    %9 = vsyncpa [#allocation3], 0
    %10 = vsyncpa [#allocation6], 0
    %11 = vsyncpa [#allocation4], 0
    %12 = vsyncpa [#allocation9], 0
    // Predicated region
    $region2: #{tpu_custom_call.1} parent=1 // pred_check
      _
    $region3: #{tpu_custom_call.1} parent=1 // pred_check_branch
      %14 = sbr.rel (0) target = $region5
    $region4: #{tpu_custom_call.1} parent=1 // pred_region
      %16 = vsyncadd [#allocation3], 0
      %s18 = sshll.u32 %s0, 4
      %s19 = int_to_ptr.hbm [resolvable:$true] %s18
      %s20 = sshll.u32 [#allocation2], 4
      %s21 = int_to_ptr.vmem [resolvable:$true] %s20
      %23 = dma.hbm_to_vmem [thread:$0]  %s19, 64, %s21, [#allocation3]
    $region5: #{tpu_custom_call.1} parent=1 // pred_fallthru
      _
    // Predicated region
    $region6: #{tpu_custom_call.1} parent=1 // pred_check
      _
    $region7: #{tpu_custom_call.1} parent=1 // pred_check_branch
      %25 = sbr.rel (0) target = $region9
    $region8: #{tpu_custom_call.1} parent=1 // pred_region
      %27 = vsyncadd [#allocation6], 0
      %s28 = sshll.u32 %s1, 4
      %s29 = int_to_ptr.hbm [resolvable:$true] %s28
      %s30 = sshll.u32 [#allocation5], 4
      %s31 = int_to_ptr.vmem [resolvable:$true] %s30
      %36 = dma.hbm_to_vmem [thread:$0]  %s29, 1024, %s31, [#allocation6], 64, 64, 4
    $region9: #{tpu_custom_call.1} parent=1 // pred_fallthru
      _
    // Predicated region
    $region10: #{tpu_custom_call.1} parent=1 // pred_check
      _
    $region11: #{tpu_custom_call.1} parent=1 // pred_check_branch
      %38 = sbr.rel (0) target = $region13
    $region12: #{tpu_custom_call.1} parent=1 // pred_region
      %40 = dma.done [#allocation3], 64
    $region13: #{tpu_custom_call.1} parent=1 // pred_fallthru
      _
    // Predicated region
    $region14: #{tpu_custom_call.1} parent=1 // pred_check
      _
    $region15: #{tpu_custom_call.1} parent=1 // pred_check_branch
      %42 = sbr.rel (0) target = $region17
    $region16: #{tpu_custom_call.1} parent=1 // pred_region
      %44 = dma.done [#allocation6], 1024
    $region17: #{tpu_custom_call.1} parent=1 // pred_fallthru
      _
    %v45 = vld [vmem:[#allocation2] sm:$0xf]
    %v46 = vld [vmem:[#allocation5] sm:$0xf]
    %v47 = vld [vmem:[#allocation5 + $0x4] sm:$0xf]
    %v48 = vld [vmem:[#allocation5 + $0x8] sm:$0xf]
    %v49 = vld [vmem:[#allocation5 + $0xc] sm:$0xf]
    %v50 = vld [vmem:[#allocation5 + $0x10] sm:$0xf]
    %v51 = vld [vmem:[#allocation5 + $0x14] sm:$0xf]
    %v52 = vld [vmem:[#allocation5 + $0x18] sm:$0xf]
    %v53 = vld [vmem:[#allocation5 + $0x1c] sm:$0xf]
    %v54 = vld [vmem:[#allocation5 + $0x20] sm:$0xf]
    %v55 = vld [vmem:[#allocation5 + $0x24] sm:$0xf]
    %v56 = vld [vmem:[#allocation5 + $0x28] sm:$0xf]
    %v57 = vld [vmem:[#allocation5 + $0x2c] sm:$0xf]
    %v58 = vld [vmem:[#allocation5 + $0x30] sm:$0xf]
    %v59 = vld [vmem:[#allocation5 + $0x34] sm:$0xf]
    %v60 = vld [vmem:[#allocation5 + $0x38] sm:$0xf]
    %v61 = vld [vmem:[#allocation5 + $0x3c] sm:$0xf]
    %v78 = vunpack.c.l.b16 %v46
    %v79 = vunpack.c.l.b16 %v47
    %v80 = vunpack.c.l.b16 %v48
    %v81 = vunpack.c.l.b16 %v49
    %v82 = vunpack.c.l.b16 %v50
    %v83 = vunpack.c.l.b16 %v51
    %v84 = vunpack.c.l.b16 %v52
    %v85 = vunpack.c.l.b16 %v53
    %v86 = vunpack.c.l.b16 %v54
    %v87 = vunpack.c.l.b16 %v55
    %v88 = vunpack.c.l.b16 %v56
    %v89 = vunpack.c.l.b16 %v57
    %v90 = vunpack.c.l.b16 %v58
    %v91 = vunpack.c.l.b16 %v59
    %v92 = vunpack.c.l.b16 %v60
    %v93 = vunpack.c.l.b16 %v61
    %v94 = vpack.c.b16 %v79, %v78
    %v95 = vpack.c.b16 %v81, %v80
    %v96 = vpack.c.b16 %v83, %v82
    %v97 = vpack.c.b16 %v85, %v84
    %v98 = vpack.c.b16 %v87, %v86
    %v99 = vpack.c.b16 %v89, %v88
    %v100 = vpack.c.b16 %v91, %v90
    %v101 = vpack.c.b16 %v93, %v92
    %110 = vmatpush.bf16.msra.mxu0 %v101
    %111 = vmatpush.bf16.msra.mxu0 %v100
    %112 = vmatpush.bf16.msra.mxu0 %v99
    %113 = vmatpush.bf16.msra.mxu0 %v98
    %114 = vmatpush.bf16.msra.mxu0 %v97
    %115 = vmatpush.bf16.msra.mxu0 %v96
    %116 = vmatpush.bf16.msra.mxu0 %v95
    %117 = vmatpush.bf16.msra.mxu0 %v94
    %118 = vmatmul.bf16.gmra.mxu0 %v45
    %v119 = vpop.f32.mrf.mxu0
    %v120 = vadd.f32 0.0, %v119
    %v121 = vpop.f32.mrf.mxu0
    %122 = vdwg.mxu0
    %v123 = vpack.c.bf16 %v120, %v120
    %124 = vst [vmem:[#allocation7] sm:$0xf] %v123
    %v125 = vrot.slane %v120, 4
    %v126 = vadd.f32 %v120, %v125
    %v127 = vrot.slane %v126, 2
    %v128 = vadd.f32 %v126, %v127
    %v129 = vrot.slane %v128, 1
    %v130 = vadd.f32 %v128, %v129
    %131 = vst [vmem:[#allocation8] sm:$0x1] %v130
    %v132 = vmul.f32 %v120, %v120
    %v133 = vrot.slane %v132, 4
    %v134 = vadd.f32 %v132, %v133
    %v135 = vrot.slane %v134, 2
    %v136 = vadd.f32 %v134, %v135
    %v137 = vrot.slane %v136, 1
    %v138 = vadd.f32 %v136, %v137
    %139 = vst [vmem:[#allocation8 + $0x1] sm:$0x1] %v138
    // Predicated region
    $region18: #{tpu_custom_call.1} parent=1 // pred_check
      _
    $region19: #{tpu_custom_call.1} parent=1 // pred_check_branch
      %141 = sbr.rel (0) target = $region21
    $region20: #{tpu_custom_call.1} parent=1 // pred_region
      %143 = vsyncadd [#allocation4], 0
      %s145 = sshll.u32 [#allocation7], 4
      %s146 = int_to_ptr.vmem [resolvable:$true] %s145
      %s147 = sshll.u32 %s2, 4
      %s148 = int_to_ptr.hbm [resolvable:$true] %s147
      %150 = dma.vmem_to_hbm [thread:$0]  %s146, 64, %s148, [#allocation4]
    $region21: #{tpu_custom_call.1} parent=1 // pred_fallthru
      _
    // Predicated region
    $region22: #{tpu_custom_call.1} parent=1 // pred_check
      _
    $region23: #{tpu_custom_call.1} parent=1 // pred_check_branch
      %152 = sbr.rel (0) target = $region25
    $region24: #{tpu_custom_call.1} parent=1 // pred_region
      %154 = vsyncadd [#allocation9], 0
      %s156 = sshll.u32 [#allocation8], 4
      %s157 = int_to_ptr.vmem [resolvable:$true] %s156
      %s158 = sshll.u32 %s3, 4
      %s159 = int_to_ptr.hbm [resolvable:$true] %s158
      %161 = dma.vmem_to_hbm [thread:$0]  %s157, 32, %s159, [#allocation9]
    $region25: #{tpu_custom_call.1} parent=1 // pred_fallthru
      _
    // Predicated region
    $region26: #{tpu_custom_call.1} parent=1 // pred_check
      _
    $region27: #{tpu_custom_call.1} parent=1 // pred_check_branch
      %163 = sbr.rel (0) target = $region29
    $region28: #{tpu_custom_call.1} parent=1 // pred_region
      %165 = dma.done [#allocation4], 64
    $region29: #{tpu_custom_call.1} parent=1 // pred_fallthru
      _
    // Predicated region
    $region30: #{tpu_custom_call.1} parent=1 // pred_check
      _
    $region31: #{tpu_custom_call.1} parent=1 // pred_check_branch
      %167 = sbr.rel (0) target = $region33
    $region32: #{tpu_custom_call.1} parent=1 // pred_region
      %169 = dma.done [#allocation9], 32
    $region33: #{tpu_custom_call.1} parent=1 // pred_fallthru
      _
    %170 = vsyncpa [#allocation3], 1
    %171 = vsyncpa [#allocation6], 1
    %172 = vsyncpa [#allocation4], 1
    %173 = vsyncpa [#allocation9], 1

</llo_original>
